<compile_context>
chip_gen: v7x
topology: tpu7x:2x2x1
jax: 0.10.0
libtpu: 0.0.40
codegen_flags: <defaults>
</compile_context>

<pallas_src>
import functools

import jax
import jax.numpy as jnp
from jax.experimental import pallas as pl
from jax.experimental.pallas import tpu as pltpu


def _round_up(x, m):
    return -(-x // m) * m


# ---------------------------------------------------------------------------
# Pallas GEMM kernel:  out = (x @ w) + shift   (BN scale pre-folded into w)
#   x, w are bf16 (MXU-native), accumulation + epilogue in f32.
#   grid = (M blocks [parallel], K blocks [arbitrary]), f32 VMEM accumulator.
# ---------------------------------------------------------------------------
def _gemm_bias_kernel(x_ref, w_ref, b_ref, o_ref, acc_ref):
    @pl.when(pl.program_id(1) == 0)
    def _():
        acc_ref[...] = jnp.zeros_like(acc_ref)

    acc_ref[...] += jnp.dot(x_ref[...], w_ref[...],
                            preferred_element_type=jnp.float32)

    @pl.when(pl.program_id(1) == pl.num_programs(1) - 1)
    def _():
        y = acc_ref[...] + b_ref[...]
        o_ref[...] = y.astype(o_ref.dtype)


def _pick_bm(m):
    # Single full-M block when it fits; otherwise 512-row tiles (multiple of 8),
    # ragged last block handled by masked edge stores (no HBM-side pad).
    return m if m <= 512 else 512


def _pick_bk(k):
    if k <= 512:
        return k
    if k % 512 == 0:
        return 512
    if k % 256 == 0:
        return 256
    return k  # TODO(synk): pad K for very large, non-divisible reductions


@functools.lru_cache(maxsize=None)
def _build_gemm(M, K, N, bm, bk, out_dtype_name):
    fn = pl.pallas_call(
        _gemm_bias_kernel,
        out_shape=jax.ShapeDtypeStruct((M, N), jnp.dtype(out_dtype_name)),
        grid=(pl.cdiv(M, bm), K // bk),
        in_specs=[
            pl.BlockSpec((bm, bk), lambda i, k: (i, k)),
            pl.BlockSpec((bk, N), lambda i, k: (k, 0)),
            pl.BlockSpec((1, N), lambda i, k: (0, 0)),
        ],
        out_specs=pl.BlockSpec((bm, N), lambda i, k: (i, 0)),
        scratch_shapes=[pltpu.VMEM((bm, N), jnp.float32)],
        compiler_params=pltpu.CompilerParams(
            dimension_semantics=("parallel", "arbitrary")),
    )
    return jax.jit(fn)


def pallas_gemm(x, w, shift, out_dtype=jnp.float32):
    """out = x @ w + shift.  bf16 MXU operands, f32 accumulate/epilogue."""
    M, K = x.shape
    N = w.shape[1]
    bm, bk = _pick_bm(M), _pick_bk(K)
    fn = _build_gemm(M, K, N, bm, bk, jnp.dtype(out_dtype).name)
    return fn(x.astype(jnp.bfloat16),
              w.astype(jnp.bfloat16),
              shift.reshape(1, N).astype(jnp.float32))


# ---------------------------------------------------------------------------
# Flash-style self-attention kernel (query == key in this module).
#   q,k,v bf16 lane-padded to 128 channels; online softmax over KV tiles;
#   scale folded into q; denominator via approx reciprocal (EUP).
# ---------------------------------------------------------------------------
_NEG_BIG = -1e30


def _flash_attn_kernel(q_ref, k_ref, v_ref, o_ref, m_sc, l_sc, acc_sc, *,
                       scale, kv_len, block_k):
    kv_idx = pl.program_id(1)

    @pl.when(kv_idx == 0)
    def _():
        m_sc[...] = jnp.full_like(m_sc, _NEG_BIG)
        l_sc[...] = jnp.zeros_like(l_sc)
        acc_sc[...] = jnp.zeros_like(acc_sc)

    q = q_ref[...] * scale                      # fold key_channels**-0.5 into q (bf16)
    s = jnp.einsum('bqd,bkd->bqk', q, k_ref[...],
                   preferred_element_type=jnp.float32)      # (B, bq, bk) f32

    # mask out padded KV positions (token-axis padding to a multiple of the tile)
    kv_pos = kv_idx * block_k + jax.lax.broadcasted_iota(jnp.int32, s.shape, 2)
    s = jnp.where(kv_pos < kv_len, s, _NEG_BIG)

    m_prev = m_sc[...]
    m_new = jnp.maximum(m_prev, jnp.max(s, axis=-1, keepdims=True))
    alpha = jnp.exp(m_prev - m_new)
    p = jnp.exp(s - m_new)
    l_sc[...] = alpha * l_sc[...] + jnp.sum(p, axis=-1, keepdims=True)
    acc_sc[...] = alpha * acc_sc[...] + jnp.einsum(
        'bqk,bkd->bqd', p.astype(v_ref.dtype), v_ref[...],
        preferred_element_type=jnp.float32)
    m_sc[...] = m_new

    @pl.when(kv_idx == pl.num_programs(1) - 1)
    def _():
        inv_l = pl.reciprocal(l_sc[...], approx=True)
        o_ref[...] = (acc_sc[...] * inv_l).astype(o_ref.dtype)


@functools.lru_cache(maxsize=None)
def _build_attention(B, Lp, Ckp, Cvp, bq, bk, scale, kv_len):
    fn = pl.pallas_call(
        functools.partial(_flash_attn_kernel, scale=scale, kv_len=kv_len,
                          block_k=bk),
        out_shape=jax.ShapeDtypeStruct((B, Lp, Cvp), jnp.bfloat16),
        grid=(Lp // bq, Lp // bk),
        in_specs=[
            pl.BlockSpec((B, bq, Ckp), lambda qi, ki: (0, qi, 0)),
            pl.BlockSpec((B, bk, Ckp), lambda qi, ki: (0, ki, 0)),
            pl.BlockSpec((B, bk, Cvp), lambda qi, ki: (0, ki, 0)),
        ],
        out_specs=pl.BlockSpec((B, bq, Cvp), lambda qi, ki: (0, qi, 0)),
        scratch_shapes=[
            pltpu.VMEM((B, bq, 1), jnp.float32),     # running max
            pltpu.VMEM((B, bq, 1), jnp.float32),     # running denom
            pltpu.VMEM((B, bq, Cvp), jnp.float32),   # output accumulator
        ],
        compiler_params=pltpu.CompilerParams(
            dimension_semantics=("parallel", "arbitrary")),
    )
    return jax.jit(fn)


def pallas_flash_attention(q, k, v, scale, kv_len):
    """q,k: (B, Lp, Ckp) bf16; v: (B, Lp, Cvp) bf16; returns (B, Lp, Cvp) bf16."""
    B, Lp, Ckp = q.shape
    Cvp = v.shape[-1]
    bq = bk = min(128, Lp)
    fn = _build_attention(B, Lp, Ckp, Cvp, bq, bk, float(scale), int(kv_len))
    return fn(q, k, v)


# ---------------------------------------------------------------------------
# XLA glue: max pool (NHWC) and bilinear resize with align_corners=True
# ---------------------------------------------------------------------------
def max_pool(x, s):
    n, h, w, c = x.shape
    hs, ws = h // s, w // s
    xc = x[:, :hs * s, :ws * s, :].reshape(n, hs, s, ws, s, c)
    return jnp.max(xc, axis=(2, 4))


def resize_bilinear_align_corners(x, oh, ow):
    n, h, w, c = x.shape
    if h == oh and w == ow:
        return x
    ys = jnp.linspace(0.0, h - 1.0, oh) if oh > 1 else jnp.zeros((oh,), jnp.float32)
    xs = jnp.linspace(0.0, w - 1.0, ow) if ow > 1 else jnp.zeros((ow,), jnp.float32)
    y0 = jnp.floor(ys).astype(jnp.int32)
    x0 = jnp.floor(xs).astype(jnp.int32)
    y1 = jnp.minimum(y0 + 1, h - 1)
    x1 = jnp.minimum(x0 + 1, w - 1)
    wy = (ys - y0.astype(jnp.float32))[None, :, None, None]
    wx = (xs - x0.astype(jnp.float32))[None, None, :, None]
    g = lambda yi, xi: x[:, yi][:, :, xi]
    top = g(y0, x0) * (1.0 - wx) + g(y0, x1) * wx
    bot = g(y1, x0) * (1.0 - wx) + g(y1, x1) * wx
    return top * (1.0 - wy) + bot * wy


# ---------------------------------------------------------------------------
# Parameters (PyTorch layouts) + folded / lane-padded GEMM matrices
# ---------------------------------------------------------------------------
def make_self_attention_params(key, in_c, key_c, val_c, out_c, scale):
    ks = jax.random.split(key, 10)

    def conv_w(k, cout, cin):
        std = (1.0 / (3.0 * cin)) ** 0.5        # stand-in for kaiming_uniform
        return std * jax.random.normal(k, (cout, cin, 1, 1), jnp.float32)

    def conv_b(k, cout, cin):
        bound = (1.0 / cin) ** 0.5
        return bound * jax.random.uniform(k, (cout,), jnp.float32, -1.0, 1.0)

    w_key, b_key = conv_w(ks[0], key_c, in_c), conv_b(ks[1], key_c, in_c)
    w_val, b_val = conv_w(ks[2], val_c, in_c), conv_b(ks[3], val_c, in_c)
    # module zero-inits W; random here so the attention path is numerically exercised
    w_W, b_W = conv_w(ks[4], out_c, val_c), conv_b(ks[5], out_c, val_c)

    gamma = jax.random.uniform(ks[6], (key_c,), jnp.float32, 0.5, 1.5)
    beta = 0.1 * jax.random.normal(ks[7], (key_c,), jnp.float32)
    mean = 0.1 * jax.random.normal(ks[8], (key_c,), jnp.float32)
    var = jax.random.uniform(ks[9], (key_c,), jnp.float32, 0.5, 1.5)
    eps = 1e-5

    # ---- fold BN into f_key, lane-pad all output channels to multiples of 128 ----
    Ckp, Cvp, Cop = (_round_up(key_c, 128), _round_up(val_c, 128),
                     _round_up(out_c, 128))
    s = gamma / jnp.sqrt(var + eps)
    wm_key = w_key[:, :, 0, 0].T * s[None, :]            # (Cin, Ck)
    sh_key = (b_key - mean) * s + beta
    wm_val = w_val[:, :, 0, 0].T                         # (Cin, Cv)
    sh_val = b_val
    wm_W = w_W[:, :, 0, 0].T                             # (Cv, Cout)
    sh_W = b_W

    pad_cols = lambda m, n: jnp.pad(m, ((0, 0), (0, n - m.shape[1])))
    pad_vec = lambda v, n: jnp.pad(v, (0, n - v.shape[0]))

    return dict(
        scale=scale, key_c=key_c, val_c=val_c, out_c=out_c,
        # raw params (used by the pure-JAX reference)
        w_key=w_key, b_key=b_key, w_value=w_val, b_value=b_val,
        w_W=w_W, b_W=b_W, bn_gamma=gamma, bn_beta=beta, bn_mean=mean,
        bn_var=var, bn_eps=eps,
        # folded + lane-padded GEMM operands (used by the Pallas path)
        w_key_p=pad_cols(wm_key, Ckp), b_key_p=pad_vec(sh_key, Ckp),
        w_value_p=pad_cols(wm_val, Cvp), b_value_p=pad_vec(sh_val, Cvp),
        w_W_p=pad_cols(jnp.pad(wm_W, ((0, Cvp - val_c), (0, 0))), Cop),
        b_W_p=pad_vec(sh_W, Cop),
    )


# ---------------------------------------------------------------------------
# SelfAttentionBlock forward (Pallas path), NCHW in / NCHW out
# ---------------------------------------------------------------------------
def self_attention_forward(p, x_nchw):
    x = jnp.transpose(x_nchw, (0, 2, 3, 1))              # NCHW -> NHWC
    n, h, w, cin = x.shape
    if p["scale"] > 1:
        x = max_pool(x, p["scale"])
    hs, ws = x.shape[1], x.shape[2]
    L = hs * ws
    xm = x.reshape(n * L, cin)

    # f_value: 1x1 conv + bias  (output lane-padded to Cvp, bf16)
    value = pallas_gemm(xm, p["w_value_p"], p["b_value_p"], out_dtype=jnp.bfloat16)
    # f_key:   1x1 conv + folded BN  (output lane-padded to Ckp, bf16)
    keyf = pallas_gemm(xm, p["w_key_p"], p["b_key_p"], out_dtype=jnp.bfloat16)

    Ckp, Cvp = keyf.shape[-1], value.shape[-1]
    q = keyf.reshape(n, L, Ckp)
    v = value.reshape(n, L, Cvp)
    Lp = _round_up(L, 128)
    if Lp != L:                                          # tiny token-axis pad for tiling
        pad = ((0, 0), (0, Lp - L), (0, 0))
        q, v = jnp.pad(q, pad), jnp.pad(v, pad)

    ctx = pallas_flash_attention(q, q, v, p["key_c"] ** (-0.5), L)   # query == key
    ctx = ctx[:, :L, :]                                  # drop padded tokens

    # W: 1x1 conv over the (lane-padded) value channels
    out = pallas_gemm(ctx.reshape(n * L, Cvp), p["w_W_p"], p["b_W_p"],
                      out_dtype=jnp.float32)
    out = out[:, :p["out_c"]].reshape(n, hs, ws, p["out_c"])
    if p["scale"] > 1:
        out = resize_bilinear_align_corners(out, h, w)
    return jnp.transpose(out, (0, 3, 1, 2))              # NHWC -> NCHW


# ---------------------------------------------------------------------------
# Pure-JAX f32 reference (mirrors the PyTorch forward exactly)
# ---------------------------------------------------------------------------
def reference_forward(p, x_nchw):
    x = jnp.transpose(x_nchw, (0, 2, 3, 1))
    n, h, w, cin = x.shape
    if p["scale"] > 1:
        x = max_pool(x, p["scale"])
    hs, ws = x.shape[1], x.shape[2]
    L = hs * ws
    xm = x.reshape(n, L, cin)

    value = xm @ p["w_value"][:, :, 0, 0].T + p["b_value"]
    keyf = xm @ p["w_key"][:, :, 0, 0].T + p["b_key"]
    s = p["bn_gamma"] / jnp.sqrt(p["bn_var"] + p["bn_eps"])
    keyf = (keyf - p["bn_mean"]) * s + p["bn_beta"]

    sim = jnp.einsum('nqc,nkc->nqk', keyf, keyf) * (p["key_c"] ** (-0.5))
    sim = jax.nn.softmax(sim, axis=-1)
    ctx = jnp.einsum('nqk,nkc->nqc', sim, value)
    ctx = ctx @ p["w_W"][:, :, 0, 0].T + p["b_W"]
    ctx = ctx.reshape(n, hs, ws, p["out_c"])
    if p["scale"] > 1:
        ctx = resize_bilinear_align_corners(ctx, h, w)
    return jnp.transpose(ctx, (0, 3, 1, 2))


# ---------------------------------------------------------------------------
if __name__ == "__main__":
    B, Cin, H, W = 2, 32, 16, 16
    key_c, val_c, out_c, scale = 16, 32, 32, 2       # module defaults: out=in of value path

    params = make_self_attention_params(jax.random.PRNGKey(0), Cin, key_c,
                                        val_c, out_c, scale)
    x = jax.random.normal(jax.random.PRNGKey(0), (B, Cin, H, W), jnp.float32)

    out = self_attention_forward(params, x)
    out = jax.block_until_ready(out)

    assert out.shape == (B, out_c, H, W), out.shape
    assert bool(jnp.all(jnp.isfinite(out)))

    ref = reference_forward(params, x)
    denom = float(jnp.max(jnp.abs(ref))) + 1e-6
    err = float(jnp.max(jnp.abs(out - ref))) / denom
    assert err < 5e-2, f"relative error too large: {err}"

    print("KERNEL_OK")
</pallas_src>

<mosaic_0001>
module attributes {stable_mosaic.version = 11 : i64} {
  func.func @_gemm_bias_kernel(%arg0: i32, %arg1: i32, %arg2: memref<128x32xbf16, #tpu.memory_space<vmem>>, %arg3: memref<32x128xbf16, #tpu.memory_space<vmem>>, %arg4: memref<1x128xf32, #tpu.memory_space<vmem>>, %arg5: memref<128x128xbf16, #tpu.memory_space<vmem>>, %arg6: memref<128x128xf32, #tpu.memory_space<vmem>>) attributes {dimension_semantics = [#tpu.dimension_semantics<parallel>, #tpu.dimension_semantics<arbitrary>], iteration_bounds = array<i64: 1, 1>, scalar_prefetch = 0 : i64, scratch_operands = 1 : i64, tpu.core_type = #tpu.core_type<tc>, window_params = [{transform_indices = @transform_0, window_bounds = array<i64: 128, 32>}, {transform_indices = @transform_1, window_bounds = array<i64: 32, 128>}, {pipeline_mode = #tpu.pipeline_mode<synchronous>, transform_indices = @transform_2, window_bounds = array<i64: 1, 128>}, {transform_indices = @transform_3, window_bounds = array<i64: 128, 128>}]} {
    %c0_i32 = arith.constant 0 : i32
    %0 = arith.cmpi eq, %arg1, %c0_i32 : i32
    %1 = arith.extui %0 : i1 to i32
    %c0_i32_0 = arith.constant 0 : i32
    %2 = arith.cmpi ne, %1, %c0_i32_0 : i32
    scf.if %2 {
      %cst_10 = arith.constant 0.000000e+00 : f32
      %12 = vector.broadcast %cst_10 : f32 to vector<128x128xf32>
      %c0_11 = arith.constant 0 : index
      %c0_12 = arith.constant 0 : index
      %13 = vector.load %arg6[%c0_11, %c0_12] : memref<128x128xf32, #tpu.memory_space<vmem>>, vector<128x128xf32>
      tpu.vector_store %arg6[%c0_11, %c0_12], %12 {strides = array<i32>} : memref<128x128xf32, #tpu.memory_space<vmem>>, vector<128x128xf32>,
    } else {
    }
    %c0 = arith.constant 0 : index
    %c0_1 = arith.constant 0 : index
    %3 = vector.load %arg6[%c0, %c0_1] : memref<128x128xf32, #tpu.memory_space<vmem>>, vector<128x128xf32>
    %c0_2 = arith.constant 0 : index
    %c0_3 = arith.constant 0 : index
    %4 = vector.load %arg2[%c0_2, %c0_3] : memref<128x32xbf16, #tpu.memory_space<vmem>>, vector<128x32xbf16>
    %c0_4 = arith.constant 0 : index
    %c0_5 = arith.constant 0 : index
    %5 = vector.load %arg3[%c0_4, %c0_5] : memref<32x128xbf16, #tpu.memory_space<vmem>>, vector<32x128xbf16>
    %cst = arith.constant dense<0.000000e+00> : vector<128x128xf32>
    %6 = tpu.matmul %4, %5, %cst {dimension_numbers = #tpu.dot_dimension_numbers<[1], [0], [0], [1], [0, 0, 1, 1], [], []>} : vector<128x32xbf16>, vector<32x128xbf16>, vector<128x128xf32> -> vector<128x128xf32>
    %7 = arith.addf %3, %6 : vector<128x128xf32>
    %c0_6 = arith.constant 0 : index
    %c0_7 = arith.constant 0 : index
    %8 = vector.load %arg6[%c0_6, %c0_7] : memref<128x128xf32, #tpu.memory_space<vmem>>, vector<128x128xf32>
    tpu.vector_store %arg6[%c0_6, %c0_7], %7 {strides = array<i32>} : memref<128x128xf32, #tpu.memory_space<vmem>>, vector<128x128xf32>,
    %c0_i32_8 = arith.constant 0 : i32
    %9 = arith.cmpi eq, %arg1, %c0_i32_8 : i32
    %10 = arith.extui %9 : i1 to i32
    %c0_i32_9 = arith.constant 0 : i32
    %11 = arith.cmpi ne, %10, %c0_i32_9 : i32
    scf.if %11 {
      %c0_10 = arith.constant 0 : index
      %c0_11 = arith.constant 0 : index
      %12 = vector.load %arg6[%c0_10, %c0_11] : memref<128x128xf32, #tpu.memory_space<vmem>>, vector<128x128xf32>
      %c0_12 = arith.constant 0 : index
      %c0_13 = arith.constant 0 : index
      %13 = vector.load %arg4[%c0_12, %c0_13] : memref<1x128xf32, #tpu.memory_space<vmem>>, vector<1x128xf32>
      %14 = vector.broadcast %13 : vector<1x128xf32> to vector<128x128xf32>
      %15 = arith.addf %12, %14 : vector<128x128xf32>
      %16 = arith.truncf %15 : vector<128x128xf32> to vector<128x128xbf16>
      %c0_14 = arith.constant 0 : index
      %c0_15 = arith.constant 0 : index
      %17 = vector.load %arg5[%c0_14, %c0_15] : memref<128x128xbf16, #tpu.memory_space<vmem>>, vector<128x128xbf16>
      tpu.vector_store %arg5[%c0_14, %c0_15], %16 {strides = array<i32>} : memref<128x128xbf16, #tpu.memory_space<vmem>>, vector<128x128xbf16>,
    } else {
    }
    return
  }
  func.func @transform_0(%arg0: i32, %arg1: i32) -> (i32, i32) {
    %c0_i32 = arith.constant 0 : i32
    return %arg0, %arg1 : i32, i32
  }
  func.func @transform_1(%arg0: i32, %arg1: i32) -> (i32, i32) {
    %c0_i32 = arith.constant 0 : i32
    %c0_i32_0 = arith.constant 0 : i32
    return %arg1, %c0_i32 : i32, i32
  }
  func.func @transform_2(%arg0: i32, %arg1: i32) -> (i32, i32) {
    %c0_i32 = arith.constant 0 : i32
    %c0_i32_0 = arith.constant 0 : i32
    %c0_i32_1 = arith.constant 0 : i32
    return %c0_i32, %c0_i32_0 : i32, i32
  }
  func.func @transform_3(%arg0: i32, %arg1: i32) -> (i32, i32) {
    %c0_i32 = arith.constant 0 : i32
    %c0_i32_0 = arith.constant 0 : i32
    return %arg0, %c0_i32 : i32, i32
  }
}

</mosaic_0001>

<llo_original>
// kernel: tpu_custom_call.1
$region0: #{tpu_custom_call.1}
  #allocation0 [shape = 'u32[]', space=smem, size = 0x4, offset = 0x4, fixed_abs, tag = 'smem constant byte address 0x4 - core index']
  #allocation1 [shape = 'u32[144,128]{1,0:T(1,128)}', space=vmem, size = 0x12000, scoped, tag = 'internal scratch']
  #allocation2 [shape = 'f32[128,128]{1,0:T(8,128)}', space=vmem, size = 0x10000, scoped, tag = 'scratch operand']
  %s0 = inlined_call_operand.vmem [shape: bf16[128,32], index: 0, kind: input, shape index: {}]
  %s1 = inlined_call_operand.vmem [shape: bf16[32,128], index: 1, kind: input, shape index: {}]
  %s2 = inlined_call_operand.vmem [shape: f32[1,128], index: 2, kind: input, shape index: {}]
  %s3 = inlined_call_operand.hbm [shape: bf16[128,128], index: 3, kind: output, shape index: {}]
  %s4 = sld [smem:[#allocation0]]
  $region30: #{tpu_custom_call.1} parent=0
    _
  %s6 = ssub.s32 1, %s4
  %s7 = scalar_select 0, %s6, %s4
  $region1: #{tpu_custom_call.1} parent=0
    #allocation3 [shape = 'u8[32768]{0}', space=vmem, size = 0x8000, scoped, tag = 'output window, operand 0, single buffered']
    #allocation4 [shape = 's32[1]{0}', space=sflag, size = 0x4, scoped, tag = 'scoped memory for tpu_custom_call.1']
    %8 = vsyncpa [#allocation4], 0
    // Predicated region
    $region2: #{tpu_custom_call.1} parent=1 // pred_check
      _
    $region3: #{tpu_custom_call.1} parent=1 // pred_check_branch
      %10 = sbr.rel (0) target = $region5
    $region4: #{tpu_custom_call.1} parent=1 // pred_region
      _
    $region5: #{tpu_custom_call.1} parent=1 // pred_fallthru
      _
    // Predicated region
    $region6: #{tpu_custom_call.1} parent=1 // pred_check
      _
    $region7: #{tpu_custom_call.1} parent=1 // pred_check_branch
      %12 = sbr.rel (0) target = $region9
    $region8: #{tpu_custom_call.1} parent=1 // pred_region
      _
    $region9: #{tpu_custom_call.1} parent=1 // pred_fallthru
      _
    // Predicated region
    $region10: #{tpu_custom_call.1} parent=1 // pred_check
      _
    $region11: #{tpu_custom_call.1} parent=1 // pred_check_branch
      %14 = sbr.rel (0) target = $region13
    $region12: #{tpu_custom_call.1} parent=1 // pred_region
      _
    $region13: #{tpu_custom_call.1} parent=1 // pred_fallthru
      _
    %p16 = scmp.eq.s32.totalorder 0, 0
    // Predicated region
    $region14: #{tpu_custom_call.1} parent=1 // pred_check
      %p17 = pneg %p16
    $region15: #{tpu_custom_call.1} parent=1 // pred_check_branch
      %19 = sbr.rel (%p17) target = $region17
    $region16: #{tpu_custom_call.1} parent=1 // pred_region
      %20 = vst [vmem:[#allocation2] sm:$0xff] 0.0
      %21 = vst [vmem:[#allocation2 + $0x8] sm:$0xff] 0.0
      %22 = vst [vmem:[#allocation2 + $0x10] sm:$0xff] 0.0
      %23 = vst [vmem:[#allocation2 + $0x18] sm:$0xff] 0.0
      %24 = vst [vmem:[#allocation2 + $0x20] sm:$0xff] 0.0
      %25 = vst [vmem:[#allocation2 + $0x28] sm:$0xff] 0.0
      %26 = vst [vmem:[#allocation2 + $0x30] sm:$0xff] 0.0
      %27 = vst [vmem:[#allocation2 + $0x38] sm:$0xff] 0.0
      %28 = vst [vmem:[#allocation2 + $0x40] sm:$0xff] 0.0
      %29 = vst [vmem:[#allocation2 + $0x48] sm:$0xff] 0.0
      %30 = vst [vmem:[#allocation2 + $0x50] sm:$0xff] 0.0
      %31 = vst [vmem:[#allocation2 + $0x58] sm:$0xff] 0.0
      %32 = vst [vmem:[#allocation2 + $0x60] sm:$0xff] 0.0
      %33 = vst [vmem:[#allocation2 + $0x68] sm:$0xff] 0.0
      %34 = vst [vmem:[#allocation2 + $0x70] sm:$0xff] 0.0
      %35 = vst [vmem:[#allocation2 + $0x78] sm:$0xff] 0.0
    $region17: #{tpu_custom_call.1} parent=1 // pred_fallthru
      _
    %v36 = vld [vmem:[#allocation2] sm:$0xff]
    %v37 = vld [vmem:[#allocation2 + $0x8] sm:$0xff]
    %v38 = vld [vmem:[#allocation2 + $0x10] sm:$0xff]
    %v39 = vld [vmem:[#allocation2 + $0x18] sm:$0xff]
    %v40 = vld [vmem:[#allocation2 + $0x20] sm:$0xff]
    %v41 = vld [vmem:[#allocation2 + $0x28] sm:$0xff]
    %v42 = vld [vmem:[#allocation2 + $0x30] sm:$0xff]
    %v43 = vld [vmem:[#allocation2 + $0x38] sm:$0xff]
    %v44 = vld [vmem:[#allocation2 + $0x40] sm:$0xff]
    %v45 = vld [vmem:[#allocation2 + $0x48] sm:$0xff]
    %v46 = vld [vmem:[#allocation2 + $0x50] sm:$0xff]
    %v47 = vld [vmem:[#allocation2 + $0x58] sm:$0xff]
    %v48 = vld [vmem:[#allocation2 + $0x60] sm:$0xff]
    %v49 = vld [vmem:[#allocation2 + $0x68] sm:$0xff]
    %v50 = vld [vmem:[#allocation2 + $0x70] sm:$0xff]
    %v51 = vld [vmem:[#allocation2 + $0x78] sm:$0xff]
    %v52 = vld [vmem:[%s0] sm:$0xf]
    %v53 = vld [vmem:[%s0 + $0x4] sm:$0xf]
    %v54 = vld [vmem:[%s0 + $0x8] sm:$0xf]
    %v55 = vld [vmem:[%s0 + $0xc] sm:$0xf]
    %v56 = vld [vmem:[%s0 + $0x10] sm:$0xf]
    %v57 = vld [vmem:[%s0 + $0x14] sm:$0xf]
    %v58 = vld [vmem:[%s0 + $0x18] sm:$0xf]
    %v59 = vld [vmem:[%s0 + $0x1c] sm:$0xf]
    %v60 = vld [vmem:[%s0 + $0x20] sm:$0xf]
    %v61 = vld [vmem:[%s0 + $0x24] sm:$0xf]
    %v62 = vld [vmem:[%s0 + $0x28] sm:$0xf]
    %v63 = vld [vmem:[%s0 + $0x2c] sm:$0xf]
    %v64 = vld [vmem:[%s0 + $0x30] sm:$0xf]
    %v65 = vld [vmem:[%s0 + $0x34] sm:$0xf]
    %v66 = vld [vmem:[%s0 + $0x38] sm:$0xf]
    %v67 = vld [vmem:[%s0 + $0x3c] sm:$0xf]
    %v68 = vld [vmem:[%s1] sm:$0xf]
    %v69 = vld [vmem:[%s1 + $0x4] sm:$0xf]
    %v70 = vld [vmem:[%s1 + $0x8] sm:$0xf]
    %v71 = vld [vmem:[%s1 + $0xc] sm:$0xf]
    %v88 = vunpack.c.l.b16 %v52
    %v89 = vunpack.c.l.b16 %v53
    %v90 = vunpack.c.l.b16 %v54
    %v91 = vunpack.c.l.b16 %v55
    %v92 = vunpack.c.l.b16 %v56
    %v93 = vunpack.c.l.b16 %v57
    %v94 = vunpack.c.l.b16 %v58
    %v95 = vunpack.c.l.b16 %v59
    %v96 = vunpack.c.l.b16 %v60
    %v97 = vunpack.c.l.b16 %v61
    %v98 = vunpack.c.l.b16 %v62
    %v99 = vunpack.c.l.b16 %v63
    %v100 = vunpack.c.l.b16 %v64
    %v101 = vunpack.c.l.b16 %v65
    %v102 = vunpack.c.l.b16 %v66
    %v103 = vunpack.c.l.b16 %v67
    %v104 = vpack.c.b16 %v89, %v88
    %v105 = vpack.c.b16 %v91, %v90
    %v106 = vpack.c.b16 %v93, %v92
    %v107 = vpack.c.b16 %v95, %v94
    %v108 = vpack.c.b16 %v97, %v96
    %v109 = vpack.c.b16 %v99, %v98
    %v110 = vpack.c.b16 %v101, %v100
    %v111 = vpack.c.b16 %v103, %v102
    %v116 = vunpack.c.l.b16 %v68
    %v117 = vunpack.c.l.b16 %v69
    %v118 = vunpack.c.l.b16 %v70
    %v119 = vunpack.c.l.b16 %v71
    %v120 = vpack.c.b16 %v117, %v116
    %v121 = vpack.c.b16 %v119, %v118
    %vm124 = vcmask 261120
    %v126 = vsel %vm124, %v104, 0
    %v129 = vsel %vm124, %v105, 0
    %v132 = vsel %vm124, %v106, 0
    %v135 = vsel %vm124, %v107, 0
    %v138 = vsel %vm124, %v108, 0
    %v141 = vsel %vm124, %v109, 0
    %v144 = vsel %vm124, %v110, 0
    %v147 = vsel %vm124, %v111, 0
    %149 = vmatprep.subr.bf16.mxu0 0
    %150 = vmatpush1.bf16.msra.mxu0 %v120
    %151 = vmatprep.subr.bf16.mxu0 0
    %152 = vmatpush1.bf16.msra.mxu0 %v121
    %153 = vmatprep.subr.bf16.mxu0 0
    %154 = vmatpush1.bf16.msra.mxu0 0
    %155 = vmatprep.subr.bf16.mxu0 0
    %156 = vmatpush1.bf16.msra.mxu0 0
    %157 = vmatprep.subr.bf16.mxu0 0
    %158 = vmatpush1.bf16.msra.mxu0 0
    %159 = vmatprep.subr.bf16.mxu0 0
    %160 = vmatpush1.bf16.msra.mxu0 0
    %161 = vmatprep.subr.bf16.mxu0 0
    %162 = vmatpush1.bf16.msra.mxu0 0
    %163 = vmatprep.subr.bf16.mxu0 0
    %164 = vmatpush1.bf16.msra.mxu0 0
    %165 = vmatprep.subr.bf16.mxu0 0
    %166 = vmatpush1.bf16.msra.mxu0 0
    %167 = vmatprep.subr.bf16.mxu0 0
    %168 = vmatpush1.bf16.msra.mxu0 0
    %169 = vmatprep.subr.bf16.mxu0 0
    %170 = vmatpush1.bf16.msra.mxu0 0
    %171 = vmatprep.subr.bf16.mxu0 0
    %172 = vmatpush1.bf16.msra.mxu0 0
    %173 = vmatprep.subr.bf16.mxu0 0
    %174 = vmatpush1.bf16.msra.mxu0 0
    %175 = vmatprep.subr.bf16.mxu0 0
    %176 = vmatpush1.bf16.msra.mxu0 0
    %177 = vmatprep.subr.bf16.mxu0 0
    %178 = vmatpush1.bf16.msra.mxu0 0
    %179 = vmatprep.subr.bf16.mxu0 0
    %180 = vmatpush1.bf16.msra.mxu0 0
    %181 = vmatprep.mubr.bf16.mxu0 0
    %182 = vmatmul.mubr.bf16.gmra.mrb[0].mxu0 %v126
    %v183 = vpop.f32.mrb[0].mxu0
    %v184 = vadd.f32 0.0, %v183
    %v185 = vpop.f32.mrb[0].mxu0
    %v186 = vpop.f32.mrb[0].mxu0
    %v187 = vadd.f32 0.0, %v186
    %v188 = vpop.f32.mrb[0].mxu0
    %189 = vmatprep.mubr.bf16.mxu0 0
    %190 = vmatmul.mubr.bf16.gmra.mrb[0].mxu0 %v129
    %v191 = vpop.f32.mrb[0].mxu0
    %v192 = vadd.f32 0.0, %v191
    %v193 = vpop.f32.mrb[0].mxu0
    %v194 = vpop.f32.mrb[0].mxu0
    %v195 = vadd.f32 0.0, %v194
    %v196 = vpop.f32.mrb[0].mxu0
    %197 = vmatprep.mubr.bf16.mxu0 0
    %198 = vmatmul.mubr.bf16.gmra.mrb[0].mxu0 %v132
    %v199 = vpop.f32.mrb[0].mxu0
    %v200 = vadd.f32 0.0, %v199
    %v201 = vpop.f32.mrb[0].mxu0
    %v202 = vpop.f32.mrb[0].mxu0
    %v203 = vadd.f32 0.0, %v202
    %v204 = vpop.f32.mrb[0].mxu0
    %205 = vmatprep.mubr.bf16.mxu0 0
    %206 = vmatmul.mubr.bf16.gmra.mrb[0].mxu0 %v135
    %v207 = vpop.f32.mrb[0].mxu0
    %v208 = vadd.f32 0.0, %v207
    %v209 = vpop.f32.mrb[0].mxu0
    %v210 = vpop.f32.mrb[0].mxu0
    %v211 = vadd.f32 0.0, %v210
    %v212 = vpop.f32.mrb[0].mxu0
    %213 = vmatprep.mubr.bf16.mxu0 0
    %214 = vmatmul.mubr.bf16.gmra.mrb[0].mxu0 %v138
    %v215 = vpop.f32.mrb[0].mxu0
    %v216 = vadd.f32 0.0, %v215
    %v217 = vpop.f32.mrb[0].mxu0
    %v218 = vpop.f32.mrb[0].mxu0
    %v219 = vadd.f32 0.0, %v218
    %v220 = vpop.f32.mrb[0].mxu0
    %221 = vmatprep.mubr.bf16.mxu0 0
    %222 = vmatmul.mubr.bf16.gmra.mrb[0].mxu0 %v141
    %v223 = vpop.f32.mrb[0].mxu0
    %v224 = vadd.f32 0.0, %v223
    %v225 = vpop.f32.mrb[0].mxu0
    %v226 = vpop.f32.mrb[0].mxu0
    %v227 = vadd.f32 0.0, %v226
    %v228 = vpop.f32.mrb[0].mxu0
    %229 = vmatprep.mubr.bf16.mxu0 0
    %230 = vmatmul.mubr.bf16.gmra.mrb[0].mxu0 %v144
    %v231 = vpop.f32.mrb[0].mxu0
    %v232 = vadd.f32 0.0, %v231
    %v233 = vpop.f32.mrb[0].mxu0
    %v234 = vpop.f32.mrb[0].mxu0
    %v235 = vadd.f32 0.0, %v234
    %v236 = vpop.f32.mrb[0].mxu0
    %237 = vmatprep.mubr.bf16.mxu0 0
    %238 = vmatmul.mubr.bf16.gmra.mrb[0].mxu0 %v147
    %v239 = vpop.f32.mrb[0].mxu0
    %v240 = vadd.f32 0.0, %v239
    %v241 = vpop.f32.mrb[0].mxu0
    %v242 = vpop.f32.mrb[0].mxu0
    %v243 = vadd.f32 0.0, %v242
    %v244 = vpop.f32.mrb[0].mxu0
    %245 = vdwg.mxu0
    %v246 = vadd.f32 %v36, %v184
    %v247 = vadd.f32 %v37, %v187
    %v248 = vadd.f32 %v38, %v192
    %v249 = vadd.f32 %v39, %v195
    %v250 = vadd.f32 %v40, %v200
    %v251 = vadd.f32 %v41, %v203
    %v252 = vadd.f32 %v42, %v208
    %v253 = vadd.f32 %v43, %v211
    %v254 = vadd.f32 %v44, %v216
    %v255 = vadd.f32 %v45, %v219
    %v256 = vadd.f32 %v46, %v224
    %v257 = vadd.f32 %v47, %v227
    %v258 = vadd.f32 %v48, %v232
    %v259 = vadd.f32 %v49, %v235
    %v260 = vadd.f32 %v50, %v240
    %v261 = vadd.f32 %v51, %v243
    %262 = vst [vmem:[#allocation2] sm:$0xff] %v246
    %263 = vst [vmem:[#allocation2 + $0x8] sm:$0xff] %v247
    %264 = vst [vmem:[#allocation2 + $0x10] sm:$0xff] %v248
    %265 = vst [vmem:[#allocation2 + $0x18] sm:$0xff] %v249
    %266 = vst [vmem:[#allocation2 + $0x20] sm:$0xff] %v250
    %267 = vst [vmem:[#allocation2 + $0x28] sm:$0xff] %v251
    %268 = vst [vmem:[#allocation2 + $0x30] sm:$0xff] %v252
    %269 = vst [vmem:[#allocation2 + $0x38] sm:$0xff] %v253
    %270 = vst [vmem:[#allocation2 + $0x40] sm:$0xff] %v254
    %271 = vst [vmem:[#allocation2 + $0x48] sm:$0xff] %v255
    %272 = vst [vmem:[#allocation2 + $0x50] sm:$0xff] %v256
    %273 = vst [vmem:[#allocation2 + $0x58] sm:$0xff] %v257
    %274 = vst [vmem:[#allocation2 + $0x60] sm:$0xff] %v258
    %275 = vst [vmem:[#allocation2 + $0x68] sm:$0xff] %v259
    %276 = vst [vmem:[#allocation2 + $0x70] sm:$0xff] %v260
    %277 = vst [vmem:[#allocation2 + $0x78] sm:$0xff] %v261
    // Predicated region
    $region18: #{tpu_custom_call.1} parent=1 // pred_check
      %p278 = pneg %p16
    $region19: #{tpu_custom_call.1} parent=1 // pred_check_branch
      %280 = sbr.rel (%p278) target = $region21
    $region20: #{tpu_custom_call.1} parent=1 // pred_region
      %v281 = vld [vmem:[#allocation2] sm:$0xff]
      %v282 = vld [vmem:[#allocation2 + $0x8] sm:$0xff]
      %v283 = vld [vmem:[#allocation2 + $0x10] sm:$0xff]
      %v284 = vld [vmem:[#allocation2 + $0x18] sm:$0xff]
      %v285 = vld [vmem:[#allocation2 + $0x20] sm:$0xff]
      %v286 = vld [vmem:[#allocation2 + $0x28] sm:$0xff]
      %v287 = vld [vmem:[#allocation2 + $0x30] sm:$0xff]
      %v288 = vld [vmem:[#allocation2 + $0x38] sm:$0xff]
      %v289 = vld [vmem:[#allocation2 + $0x40] sm:$0xff]
      %v290 = vld [vmem:[#allocation2 + $0x48] sm:$0xff]
      %v291 = vld [vmem:[#allocation2 + $0x50] sm:$0xff]
      %v292 = vld [vmem:[#allocation2 + $0x58] sm:$0xff]
      %v293 = vld [vmem:[#allocation2 + $0x60] sm:$0xff]
      %v294 = vld [vmem:[#allocation2 + $0x68] sm:$0xff]
      %v295 = vld [vmem:[#allocation2 + $0x70] sm:$0xff]
      %v296 = vld [vmem:[#allocation2 + $0x78] sm:$0xff]
      %v297 = vld [vmem:[%s2] sm:$0x1]
      %v299 = vlaneseq
      %v300 = vshrl.u32 %v299, 7
      %v301 = vsub.s32 0, %v300
      %v302 = vrot.slane %v297, %v301
      %v304 = vadd.f32 %v281, %v302
      %v305 = vadd.f32 %v282, %v302
      %v306 = vadd.f32 %v283, %v302
      %v307 = vadd.f32 %v284, %v302
      %v308 = vadd.f32 %v285, %v302
      %v309 = vadd.f32 %v286, %v302
      %v310 = vadd.f32 %v287, %v302
      %v311 = vadd.f32 %v288, %v302
      %v312 = vadd.f32 %v289, %v302
      %v313 = vadd.f32 %v290, %v302
      %v314 = vadd.f32 %v291, %v302
      %v315 = vadd.f32 %v292, %v302
      %v316 = vadd.f32 %v293, %v302
      %v317 = vadd.f32 %v294, %v302
      %v318 = vadd.f32 %v295, %v302
      %v319 = vadd.f32 %v296, %v302
      %v320 = vpack.c.bf16 %v305, %v304
      %v321 = vpack.c.bf16 %v307, %v306
      %v322 = vpack.c.bf16 %v309, %v308
      %v323 = vpack.c.bf16 %v311, %v310
      %v324 = vpack.c.bf16 %v313, %v312
      %v325 = vpack.c.bf16 %v315, %v314
      %v326 = vpack.c.bf16 %v317, %v316
      %v327 = vpack.c.bf16 %v319, %v318
      %v336 = vunpack.c.l.b16 %v320
      %v337 = vunpack.c.h.b16 %v320
      %v338 = vunpack.c.l.b16 %v321
      %v339 = vunpack.c.h.b16 %v321
      %v340 = vunpack.c.l.b16 %v322
      %v341 = vunpack.c.h.b16 %v322
      %v342 = vunpack.c.l.b16 %v323
      %v343 = vunpack.c.h.b16 %v323
      %v344 = vunpack.c.l.b16 %v324
      %v345 = vunpack.c.h.b16 %v324
      %v346 = vunpack.c.l.b16 %v325
      %v347 = vunpack.c.h.b16 %v325
      %v348 = vunpack.c.l.b16 %v326
      %v349 = vunpack.c.h.b16 %v326
      %v350 = vunpack.c.l.b16 %v327
      %v351 = vunpack.c.h.b16 %v327
      %v352 = vpack.c.b16 %v336, %v336
      %v353 = vpack.c.b16 %v337, %v337
      %v354 = vpack.c.b16 %v338, %v338
      %v355 = vpack.c.b16 %v339, %v339
      %v356 = vpack.c.b16 %v340, %v340
      %v357 = vpack.c.b16 %v341, %v341
      %v358 = vpack.c.b16 %v342, %v342
      %v359 = vpack.c.b16 %v343, %v343
      %v360 = vpack.c.b16 %v344, %v344
      %v361 = vpack.c.b16 %v345, %v345
      %v362 = vpack.c.b16 %v346, %v346
      %v363 = vpack.c.b16 %v347, %v347
      %v364 = vpack.c.b16 %v348, %v348
      %v365 = vpack.c.b16 %v349, %v349
      %v366 = vpack.c.b16 %v350, %v350
      %v367 = vpack.c.b16 %v351, %v351
      %384 = vst [vmem:[#allocation3] sm:$0xf] %v352
      %385 = vst [vmem:[#allocation3 + $0x4] sm:$0xf] %v353
      %386 = vst [vmem:[#allocation3 + $0x8] sm:$0xf] %v354
      %387 = vst [vmem:[#allocation3 + $0xc] sm:$0xf] %v355
      %388 = vst [vmem:[#allocation3 + $0x10] sm:$0xf] %v356
      %389 = vst [vmem:[#allocation3 + $0x14] sm:$0xf] %v357
      %390 = vst [vmem:[#allocation3 + $0x18] sm:$0xf] %v358
      %391 = vst [vmem:[#allocation3 + $0x1c] sm:$0xf] %v359
      %392 = vst [vmem:[#allocation3 + $0x20] sm:$0xf] %v360
      %393 = vst [vmem:[#allocation3 + $0x24] sm:$0xf] %v361
      %394 = vst [vmem:[#allocation3 + $0x28] sm:$0xf] %v362
      %395 = vst [vmem:[#allocation3 + $0x2c] sm:$0xf] %v363
      %396 = vst [vmem:[#allocation3 + $0x30] sm:$0xf] %v364
      %397 = vst [vmem:[#allocation3 + $0x34] sm:$0xf] %v365
      %398 = vst [vmem:[#allocation3 + $0x38] sm:$0xf] %v366
      %399 = vst [vmem:[#allocation3 + $0x3c] sm:$0xf] %v367
    $region21: #{tpu_custom_call.1} parent=1 // pred_fallthru
      _
    // Predicated region
    $region22: #{tpu_custom_call.1} parent=1 // pred_check
      _
    $region23: #{tpu_custom_call.1} parent=1 // pred_check_branch
      %401 = sbr.rel (0) target = $region25
    $region24: #{tpu_custom_call.1} parent=1 // pred_region
      %s403 = ssub.s32 1024, 1024
      %404 = vsyncadd [#allocation4], %s403
      %s405 = sshll.u32 [#allocation3], 4
      %s406 = int_to_ptr.vmem [resolvable:$true] %s405
      %411 = dma.vmem_to_hbm [thread:$0]  %s406, 1024, %s3, [#allocation4], 64, 64, 4
    $region25: #{tpu_custom_call.1} parent=1 // pred_fallthru
      _
    // Predicated region
    $region26: #{tpu_custom_call.1} parent=1 // pred_check
      _
    $region27: #{tpu_custom_call.1} parent=1 // pred_check_branch
      %413 = sbr.rel (0) target = $region29
    $region28: #{tpu_custom_call.1} parent=1 // pred_region
      %414 = dma.done [#allocation4], 1024
    $region29: #{tpu_custom_call.1} parent=1 // pred_fallthru
      _
    %415 = vsyncpa [#allocation4], 1

</llo_original>
